<compile_context>
chip_gen: v6e
topology: v6e:2x2x1
jax: 0.10.0
libtpu: 0.0.40
codegen_flags: <defaults>
</compile_context>

<pallas_src>
import functools

import jax
import jax.numpy as jnp
import numpy as np
from jax.experimental import pallas as pl
from jax.experimental.pallas import tpu as pltpu


def _round_up(n, m):
    return ((n + m - 1) // m) * m


def _vmem_limit_bytes():
    """~75% of physical VMEM: ~48 MiB on v7x (64 MiB), ~96 MiB on v5e/v6e (128 MiB)."""
    try:
        info = pltpu.get_tpu_info()
        cap = getattr(info, "vmem_capacity_bytes", None)
        if cap:
            return int(cap) * 3 // 4
    except Exception:
        pass
    return 48 << 20  # safe on every generation


def _pick_batch_tile(B, T_pad, D, itemsize):
    """~2 MiB x tiles, multiple of 8, >=2 grid steps when the batch allows it."""
    if B < 16:
        return B  # tiny batch: single tile / single grid step
    per_batch_elem = T_pad * D * itemsize
    target = 2 << 20
    bt = max(8, target // max(per_batch_elem, 1))
    bt = max(bt, -(-128 // T_pad))      # keep flattened M = bt*T_pad >= 128 for the MXU
    bt = min(bt, B // 2)                # >=2 grid steps: pipelining + both v7x TCs
    bt = max(8, (bt // 8) * 8)
    while bt > 8 and B % bt:
        bt -= 8
    return bt if B % bt == 0 else B


def _regressor2_kernel(x_ref, w_ref, b_ref, o_ref, *, t_real, t_pad):
    # x_ref: (Bt, T_pad, D)   w_ref: (D, F_pad)   b_ref: (1, F_pad)   o_ref: (Bt, F_pad)
    Bt = x_ref.shape[0]
    D = x_ref.shape[2]
    F_pad = w_ref.shape[1]

    # One lane-dense MXU matmul over every (batch, time) row in the tile.
    x2 = x_ref[...].reshape(Bt * t_pad, D)                               # free: T_pad % 8 == 0
    y = jnp.dot(x2, w_ref[...], preferred_element_type=jnp.float32)      # (Bt*T_pad, F_pad) f32
    y = y + b_ref[...].astype(jnp.float32)                               # (1, F_pad) broadcast

    # LeakyReLU, PyTorch default negative_slope = 0.01; zero-padded F lanes stay zero.
    y = jnp.where(y >= 0, y, 0.01 * y)

    # Mean over time: regroup, mask zero-padded time rows (if any), sublane-reduce, scale.
    y = y.reshape(Bt, t_pad, F_pad)
    if t_pad != t_real:
        t_idx = jax.lax.broadcasted_iota(jnp.int32, (Bt, t_pad, F_pad), 1)
        y = jnp.where(t_idx < t_real, y, 0.0)
    o_ref[...] = (jnp.sum(y, axis=1) * (1.0 / t_real)).astype(o_ref.dtype)


def prepare_regressor2_params(w, b, *, matmul_dtype=None):
    """Hoisted once-per-parameter-set prep.

    w: (F, D) PyTorch Linear weight; b: (F,) bias.
    Returns (wt_pad (D, F_pad), b_pad (1, F_pad) f32, F) with F_pad a multiple of 128.
    """
    F, D = w.shape
    F_pad = _round_up(F, 128)
    wt = jnp.asarray(w).T                                   # (D, F): output lane-dense in F
    if F_pad != F:
        wt = jnp.pad(wt, ((0, 0), (0, F_pad - F)))          # zero-padded columns
    if matmul_dtype is not None:
        wt = wt.astype(matmul_dtype)
    b_pad = jnp.zeros((1, F_pad), jnp.float32).at[0, :F].set(
        jnp.asarray(b).astype(jnp.float32))                 # padded bias lanes are zero
    return wt, b_pad, F


def regressor2_apply(x, wt_pad, b_pad, out_features, *, matmul_dtype=None, batch_tile=None):
    """x: (B, T, D); wt_pad: (D, F_pad); b_pad: (1, F_pad); returns (B, out_features)."""
    B, T, D = x.shape
    Dw, F_pad = wt_pad.shape
    assert Dw == D
    out_dtype = x.dtype

    if matmul_dtype is not None and x.dtype != matmul_dtype:
        # Ideally the caller already stores x in this dtype (halves HBM traffic in-kernel).
        x = x.astype(matmul_dtype)

    # Pad T (sublane dim) to a multiple of 8 so the in-kernel reshapes are layout-free.
    T_pad = _round_up(T, 8)
    if T_pad != T:
        x = jnp.pad(x, ((0, 0), (0, T_pad - T), (0, 0)))

    if batch_tile is None:
        batch_tile = _pick_batch_tile(B, T_pad, D, x.dtype.itemsize)
    assert B % batch_tile == 0, "batch_tile must divide B"
    assert batch_tile == B or batch_tile % 8 == 0, "batch_tile must be a multiple of 8 or == B"
    grid = (B // batch_tile,)

    kernel = functools.partial(_regressor2_kernel, t_real=T, t_pad=T_pad)
    params = pltpu.CompilerParams(
        dimension_semantics=("parallel",),          # batch tiles shard across v7x's 2 TCs
        vmem_limit_bytes=_vmem_limit_bytes(),
    )

    def call(single_buffer_consts):
        if single_buffer_consts:
            # Grid-invariant blocks: one VMEM buffer is enough (frees VMEM for x tiles).
            w_spec = pl.BlockSpec((D, F_pad), lambda i: (0, 0), pipeline_mode=pl.Buffered(1))
            b_spec = pl.BlockSpec((1, F_pad), lambda i: (0, 0), pipeline_mode=pl.Buffered(1))
        else:
            w_spec = pl.BlockSpec((D, F_pad), lambda i: (0, 0))
            b_spec = pl.BlockSpec((1, F_pad), lambda i: (0, 0))
        return pl.pallas_call(
            kernel,
            out_shape=jax.ShapeDtypeStruct((B, F_pad), out_dtype),
            grid=grid,
            in_specs=[
                pl.BlockSpec((batch_tile, T_pad, D), lambda i: (i, 0, 0)),
                w_spec,
                b_spec,
            ],
            out_specs=pl.BlockSpec((batch_tile, F_pad), lambda i: (i, 0)),
            compiler_params=params,
        )(x, wt_pad, b_pad)

    try:
        out = call(True)
    except Exception:
        # Installed JAX rejected pipeline_mode / Buffered(1): fall back to defaults.
        out = call(False)

    if F_pad != out_features:
        out = out[:, :out_features]                 # drop zero-padded lanes
    return out


def regressor2(x, w, b, *, matmul_dtype=None, batch_tile=None):
    """Convenience wrapper. For repeated calls, hoist prepare_regressor2_params()."""
    wt_pad, b_pad, f_out = prepare_regressor2_params(w, b, matmul_dtype=matmul_dtype)
    return regressor2_apply(x, wt_pad, b_pad, f_out,
                            matmul_dtype=matmul_dtype, batch_tile=batch_tile)


if __name__ == "__main__":
    # batch=2, seq (time)=8, input_size=32, final_units=32
    B, T, D, F = 2, 8, 32, 32

    key = jax.random.PRNGKey(0)
    kx, kw, kb = jax.random.split(key, 3)

    x = jax.random.normal(kx, (B, T, D), dtype=jnp.float32)
    bound = 1.0 / np.sqrt(D)
    w = jax.random.uniform(kw, (F, D), minval=-bound, maxval=bound, dtype=jnp.float32)
    b = jax.random.uniform(kb, (F,), minval=-bound, maxval=bound, dtype=jnp.float32)

    # NumPy reference mirroring the PyTorch forward: Linear -> LeakyReLU -> mean(dim=1).
    xn, wn, bn = np.asarray(x), np.asarray(w), np.asarray(b)
    y_ref = np.einsum("btd,fd->btf", xn, wn) + bn
    y_ref = np.where(y_ref >= 0, y_ref, 0.01 * y_ref)
    ref = y_ref.mean(axis=1)

    # f32 path (parameters prepared once, reused for the call).
    wt_pad, b_pad, f_out = prepare_regressor2_params(w, b)
    out = regressor2_apply(x, wt_pad, b_pad, f_out)
    out = jax.block_until_ready(out)
    np.testing.assert_allclose(np.asarray(out), ref, rtol=1e-4, atol=1e-4)

    # bf16-matmul path: halved x HBM traffic, f32 accumulation/elementwise (looser tol).
    wt16, b16, _ = prepare_regressor2_params(w, b, matmul_dtype=jnp.bfloat16)
    out16 = regressor2_apply(x, wt16, b16, f_out, matmul_dtype=jnp.bfloat16)
    out16 = jax.block_until_ready(out16)
    np.testing.assert_allclose(np.asarray(out16), ref, rtol=5e-2, atol=5e-2)

    print("KERNEL_OK")
</pallas_src>

<mosaic_0001>
module attributes {stable_mosaic.version = 11 : i64} {
  func.func @_regressor2_kernel(%arg0: i32, %arg1: memref<2x8x32xf32, #tpu.memory_space<vmem>>, %arg2: memref<32x128xf32, #tpu.memory_space<vmem>>, %arg3: memref<1x128xf32, #tpu.memory_space<vmem>>, %arg4: memref<2x128xf32, #tpu.memory_space<vmem>>) attributes {dimension_semantics = [#tpu.dimension_semantics<parallel>], iteration_bounds = array<i64: 1>, scalar_prefetch = 0 : i64, scratch_operands = 0 : i64, tpu.core_type = #tpu.core_type<tc>, window_params = [{transform_indices = @transform_0, window_bounds = array<i64: 2, 8, 32>}, {pipeline_mode = #tpu.pipeline_mode<synchronous>, transform_indices = @transform_1, window_bounds = array<i64: 32, 128>}, {pipeline_mode = #tpu.pipeline_mode<synchronous>, transform_indices = @transform_2, window_bounds = array<i64: 1, 128>}, {transform_indices = @transform_3, window_bounds = array<i64: 2, 128>}]} {
    %c0 = arith.constant 0 : index
    %c0_0 = arith.constant 0 : index
    %c0_1 = arith.constant 0 : index
    %0 = vector.load %arg1[%c0, %c0_0, %c0_1] : memref<2x8x32xf32, #tpu.memory_space<vmem>>, vector<2x8x32xf32>
    %1 = vector.shape_cast %0 : vector<2x8x32xf32> to vector<16x32xf32>
    %c0_2 = arith.constant 0 : index
    %c0_3 = arith.constant 0 : index
    %2 = vector.load %arg2[%c0_2, %c0_3] : memref<32x128xf32, #tpu.memory_space<vmem>>, vector<32x128xf32>
    %cst = arith.constant dense<0.000000e+00> : vector<16x128xf32>
    %3 = tpu.matmul %1, %2, %cst {dimension_numbers = #tpu.dot_dimension_numbers<[1], [0], [0], [1], [0, 0, 1, 1], [], []>} : vector<16x32xf32>, vector<32x128xf32>, vector<16x128xf32> -> vector<16x128xf32>
    %c0_4 = arith.constant 0 : index
    %c0_5 = arith.constant 0 : index
    %4 = vector.load %arg3[%c0_4, %c0_5] : memref<1x128xf32, #tpu.memory_space<vmem>>, vector<1x128xf32>
    %5 = vector.broadcast %4 : vector<1x128xf32> to vector<16x128xf32>
    %6 = arith.addf %3, %5 : vector<16x128xf32>
    %cst_6 = arith.constant 0.000000e+00 : f32
    %7 = vector.broadcast %cst_6 : f32 to vector<16x128xf32>
    %8 = arith.cmpf oge, %6, %7 : vector<16x128xf32>
    %cst_7 = arith.constant 0.00999999977 : f32
    %9 = vector.broadcast %cst_7 : f32 to vector<16x128xf32>
    %10 = arith.mulf %9, %6 : vector<16x128xf32>
    %11 = arith.select %8, %6, %10 : vector<16x128xi1>, vector<16x128xf32>
    %12 = vector.shape_cast %11 : vector<16x128xf32> to vector<2x8x128xf32>
    %cst_8 = arith.constant dense<0.000000e+00> : vector<2x128xf32>
    %13 = vector.multi_reduction <add>, %12, %cst_8 [1] : vector<2x8x128xf32> to vector<2x128xf32>
    %cst_9 = arith.constant 1.250000e-01 : f32
    %14 = vector.broadcast %cst_9 : f32 to vector<2x128xf32>
    %15 = arith.mulf %13, %14 : vector<2x128xf32>
    %c0_10 = arith.constant 0 : index
    %c0_11 = arith.constant 0 : index
    %16 = vector.load %arg4[%c0_10, %c0_11] : memref<2x128xf32, #tpu.memory_space<vmem>>, vector<2x128xf32>
    tpu.vector_store %arg4[%c0_10, %c0_11], %15 {strides = array<i32>} : memref<2x128xf32, #tpu.memory_space<vmem>>, vector<2x128xf32>,
    return
  }
  func.func @transform_0(%arg0: i32) -> (i32, i32, i32) {
    %c0_i32 = arith.constant 0 : i32
    %c0_i32_0 = arith.constant 0 : i32
    %c0_i32_1 = arith.constant 0 : i32
    return %arg0, %c0_i32, %c0_i32_0 : i32, i32, i32
  }
  func.func @transform_1(%arg0: i32) -> (i32, i32) {
    %c0_i32 = arith.constant 0 : i32
    %c0_i32_0 = arith.constant 0 : i32
    %c0_i32_1 = arith.constant 0 : i32
    return %c0_i32, %c0_i32_0 : i32, i32
  }
  func.func @transform_2(%arg0: i32) -> (i32, i32) {
    %c0_i32 = arith.constant 0 : i32
    %c0_i32_0 = arith.constant 0 : i32
    %c0_i32_1 = arith.constant 0 : i32
    return %c0_i32, %c0_i32_0 : i32, i32
  }
  func.func @transform_3(%arg0: i32) -> (i32, i32) {
    %c0_i32 = arith.constant 0 : i32
    %c0_i32_0 = arith.constant 0 : i32
    return %arg0, %c0_i32 : i32, i32
  }
}

module attributes {stable_mosaic.version = 11 : i64} {
  func.func @_regressor2_kernel(%arg0: i32, %arg1: memref<2x8x32xf32, #tpu.memory_space<vmem>>, %arg2: memref<32x128xf32, #tpu.memory_space<vmem>>, %arg3: memref<1x128xf32, #tpu.memory_space<vmem>>, %arg4: memref<2x128xf32, #tpu.memory_space<vmem>>) attributes {dimension_semantics = [#tpu.dimension_semantics<parallel>], iteration_bounds = array<i64: 1>, scalar_prefetch = 0 : i64, scratch_operands = 0 : i64, tpu.core_type = #tpu.core_type<tc>, window_params = [{transform_indices = @transform_0, window_bounds = array<i64: 2, 8, 32>}, {pipeline_mode = #tpu.pipeline_mode<synchronous>, transform_indices = @transform_1, window_bounds = array<i64: 32, 128>}, {pipeline_mode = #tpu.pipeline_mode<synchronous>, transform_indices = @transform_2, window_bounds = array<i64: 1, 128>}, {transform_indices = @transform_3, window_bounds = array<i64: 2, 128>}]} {
    %c0 = arith.constant 0 : index
    %c0_0 = arith.constant 0 : index
    %c0_1 = arith.constant 0 : index
    %0 = vector.load %arg1[%c0, %c0_0, %c0_1] : memref<2x8x32xf32, #tpu.memory_space<vmem>>, vector<2x8x32xf32>
    %1 = vector.shape_cast %0 : vector<2x8x32xf32> to vector<16x32xf32>
    %c0_2 = arith.constant 0 : index
    %c0_3 = arith.constant 0 : index
    %2 = vector.load %arg2[%c0_2, %c0_3] : memref<32x128xf32, #tpu.memory_space<vmem>>, vector<32x128xf32>
    %cst = arith.constant dense<0.000000e+00> : vector<16x128xf32>
    %3 = tpu.matmul %1, %2, %cst {dimension_numbers = #tpu.dot_dimension_numbers<[1], [0], [0], [1], [0, 0, 1, 1], [], []>} : vector<16x32xf32>, vector<32x128xf32>, vector<16x128xf32> -> vector<16x128xf32>
    %c0_4 = arith.constant 0 : index
    %c0_5 = arith.constant 0 : index
    %4 = vector.load %arg3[%c0_4, %c0_5] : memref<1x128xf32, #tpu.memory_space<vmem>>, vector<1x128xf32>
    %5 = vector.broadcast %4 : vector<1x128xf32> to vector<16x128xf32>
    %6 = arith.addf %3, %5 : vector<16x128xf32>
    %cst_6 = arith.constant 0.000000e+00 : f32
    %7 = vector.broadcast %cst_6 : f32 to vector<16x128xf32>
    %8 = arith.cmpf oge, %6, %7 : vector<16x128xf32>
    %cst_7 = arith.constant 0.00999999977 : f32
    %9 = vector.broadcast %cst_7 : f32 to vector<16x128xf32>
    %10 = arith.mulf %9, %6 : vector<16x128xf32>
    %11 = arith.select %8, %6, %10 : vector<16x128xi1>, vector<16x128xf32>
    %12 = vector.shape_cast %11 : vector<16x128xf32> to vector<2x8x128xf32>
    %cst_8 = arith.constant dense<0.000000e+00> : vector<2x128xf32>
    %13 = vector.multi_reduction <add>, %12, %cst_8 [1] : vector<2x8x128xf32> to vector<2x128xf32>
    %cst_9 = arith.constant 1.250000e-01 : f32
    %14 = vector.broadcast %cst_9 : f32 to vector<2x128xf32>
    %15 = arith.mulf %13, %14 : vector<2x128xf32>
    %c0_10 = arith.constant 0 : index
    %c0_11 = arith.constant 0 : index
    %16 = vector.load %arg4[%c0_10, %c0_11] : memref<2x128xf32, #tpu.memory_space<vmem>>, vector<2x128xf32>
    tpu.vector_store %arg4[%c0_10, %c0_11], %15 {strides = array<i32>} : memref<2x128xf32, #tpu.memory_space<vmem>>, vector<2x128xf32>,
    return
  }
  func.func @transform_0(%arg0: i32) -> (i32, i32, i32) {
    %c0_i32 = arith.constant 0 : i32
    %c0_i32_0 = arith.constant 0 : i32
    %c0_i32_1 = arith.constant 0 : i32
    return %arg0, %c0_i32, %c0_i32_0 : i32, i32, i32
  }
  func.func @transform_1(%arg0: i32) -> (i32, i32) {
    %c0_i32 = arith.constant 0 : i32
    %c0_i32_0 = arith.constant 0 : i32
    %c0_i32_1 = arith.constant 0 : i32
    return %c0_i32, %c0_i32_0 : i32, i32
  }
  func.func @transform_2(%arg0: i32) -> (i32, i32) {
    %c0_i32 = arith.constant 0 : i32
    %c0_i32_0 = arith.constant 0 : i32
    %c0_i32_1 = arith.constant 0 : i32
    return %c0_i32, %c0_i32_0 : i32, i32
  }
  func.func @transform_3(%arg0: i32) -> (i32, i32) {
    %c0_i32 = arith.constant 0 : i32
    %c0_i32_0 = arith.constant 0 : i32
    return %arg0, %c0_i32 : i32, i32
  }
}

</mosaic_0001>

<llo_original>
// kernel: tpu_custom_call.1
$region0: #{tpu_custom_call.1}
  #allocation0 [shape = 'u32[]', space=smem, size = 0x4, offset = 0x4, fixed_abs, tag = 'smem constant byte address 0x4 - core index']
  #allocation1 [shape = 'u32[144,128]{1,0:T(1,128)}', space=vmem, size = 0x12000, scoped, tag = 'internal scratch']
  %s0 = inlined_call_operand.hbm [shape: f32[2,8,32], index: 0, kind: input, shape index: {}]
  %s1 = inlined_call_operand.hbm [shape: f32[32,128], index: 1, kind: input, shape index: {}]
  %s2 = inlined_call_operand.vmem [shape: f32[1,128], index: 2, kind: input, shape index: {}]
  %s3 = inlined_call_operand.hbm [shape: f32[2,128], index: 3, kind: output, shape index: {}]
  %s4 = sld [smem:[#allocation0]]
  $region30: #{tpu_custom_call.1} parent=0
    _
  %s6 = ssub.s32 1, %s4
  %s7 = scalar_select 0, %s6, %s4
  $region1: #{tpu_custom_call.1} parent=0
    #allocation2 [shape = 'u8[8192]{0}', space=vmem, size = 0x2000, scoped, tag = 'input window, operand 0, single buffered']
    #allocation3 [shape = 's32[1]{0}', space=sflag, size = 0x4, scoped, tag = 'scoped memory for tpu_custom_call.1']
    #allocation4 [shape = 's32[1]{0}', space=sflag, size = 0x4, scoped, tag = 'scoped memory for tpu_custom_call.1']
    #allocation5 [shape = 'u8[16384]{0}', space=vmem, size = 0x4000, scoped, tag = 'input window, operand 1, single buffered']
    #allocation6 [shape = 's32[1]{0}', space=sflag, size = 0x4, scoped, tag = 'scoped memory for tpu_custom_call.1']
    #allocation7 [shape = 'u8[1024]{0}', space=vmem, size = 0x400, scoped, tag = 'output window, operand 0, single buffered']
    %8 = vsyncpa [#allocation3], 0
    %9 = vsyncpa [#allocation6], 0
    %10 = vsyncpa [#allocation4], 0
    // Predicated region
    $region2: #{tpu_custom_call.1} parent=1 // pred_check
      _
    $region3: #{tpu_custom_call.1} parent=1 // pred_check_branch
      %12 = sbr.rel (0) target = $region5
    $region4: #{tpu_custom_call.1} parent=1 // pred_region
      %s14 = ssub.s32 256, 256
      %15 = vsyncadd [#allocation3], %s14
      %s16 = sshll.u32 [#allocation2], 4
      %s17 = int_to_ptr.vmem [resolvable:$true] %s16
      %22 = dma.hbm_to_vmem [thread:$0]  %s0, 256, %s17, [#allocation3], 128, 128, 8
    $region5: #{tpu_custom_call.1} parent=1 // pred_fallthru
      _
    // Predicated region
    $region6: #{tpu_custom_call.1} parent=1 // pred_check
      _
    $region7: #{tpu_custom_call.1} parent=1 // pred_check_branch
      %24 = sbr.rel (0) target = $region9
    $region8: #{tpu_custom_call.1} parent=1 // pred_region
      %s26 = ssub.s32 512, 512
      %27 = vsyncadd [#allocation6], %s26
      %s28 = sshll.u32 [#allocation5], 4
      %s29 = int_to_ptr.vmem [resolvable:$true] %s28
      %34 = dma.hbm_to_vmem [thread:$0]  %s1, 512, %s29, [#allocation6], 128, 128, 8
    $region9: #{tpu_custom_call.1} parent=1 // pred_fallthru
      _
    // Predicated region
    $region10: #{tpu_custom_call.1} parent=1 // pred_check
      _
    $region11: #{tpu_custom_call.1} parent=1 // pred_check_branch
      %36 = sbr.rel (0) target = $region13
    $region12: #{tpu_custom_call.1} parent=1 // pred_region
      _
    $region13: #{tpu_custom_call.1} parent=1 // pred_fallthru
      _
    // Predicated region
    $region14: #{tpu_custom_call.1} parent=1 // pred_check
      _
    $region15: #{tpu_custom_call.1} parent=1 // pred_check_branch
      %38 = sbr.rel (0) target = $region17
    $region16: #{tpu_custom_call.1} parent=1 // pred_region
      %39 = dma.done [#allocation3], 256
    $region17: #{tpu_custom_call.1} parent=1 // pred_fallthru
      _
    // Predicated region
    $region18: #{tpu_custom_call.1} parent=1 // pred_check
      _
    $region19: #{tpu_custom_call.1} parent=1 // pred_check_branch
      %41 = sbr.rel (0) target = $region21
    $region20: #{tpu_custom_call.1} parent=1 // pred_region
      %42 = dma.done [#allocation6], 512
    $region21: #{tpu_custom_call.1} parent=1 // pred_fallthru
      _
    %v43 = vld [vmem:[#allocation2] sm:$0xff]
    %v44 = vld [vmem:[#allocation2 + $0x8] sm:$0xff]
    %v45 = vld [vmem:[#allocation5] sm:$0xff]
    %v46 = vld [vmem:[#allocation5 + $0x8] sm:$0xff]
    %v47 = vld [vmem:[#allocation5 + $0x10] sm:$0xff]
    %v48 = vld [vmem:[#allocation5 + $0x18] sm:$0xff]
    %v49 = vld [vmem:[%s2] sm:$0x1]
    %v51 = vlaneseq
    %v52 = vshrl.u32 %v51, 7
    %v53 = vsub.s32 0, %v52
    %v54 = vrot.slane %v49, %v53
    %vm56 = vcmask 261120
    %v58 = vsel %vm56, %v43, 0
    %v61 = vsel %vm56, %v44, 0
    %63 = vmatprep.subr.mxu0 0.0
    %64 = vmatpush1.msra.mxu0 0.0
    %65 = vmatprep.subr.mxu0 0.0
    %66 = vmatpush1.msra.mxu0 0.0
    %67 = vmatprep.subr.mxu0 0.0
    %68 = vmatpush1.msra.mxu0 0.0
    %69 = vmatprep.subr.mxu0 0.0
    %70 = vmatpush1.msra.mxu0 0.0
    %71 = vmatprep.subr.mxu0 0.0
    %72 = vmatpush1.msra.mxu0 0.0
    %73 = vmatprep.subr.mxu0 0.0
    %74 = vmatpush1.msra.mxu0 0.0
    %75 = vmatprep.subr.mxu0 0.0
    %76 = vmatpush1.msra.mxu0 0.0
    %77 = vmatprep.subr.mxu0 0.0
    %78 = vmatpush1.msra.mxu0 0.0
    %79 = vmatprep.subr.mxu0 0.0
    %80 = vmatpush1.msra.mxu0 0.0
    %81 = vmatprep.subr.mxu0 0.0
    %82 = vmatpush1.msra.mxu0 0.0
    %83 = vmatprep.subr.mxu0 0.0
    %84 = vmatpush1.msra.mxu0 0.0
    %85 = vmatprep.subr.mxu0 0.0
    %86 = vmatpush1.msra.mxu0 0.0
    %87 = vmatprep.subr.mxu0 0.0
    %88 = vmatpush1.msra.mxu0 %v48
    %89 = vmatprep.subr.mxu0 0.0
    %90 = vmatpush1.msra.mxu0 %v47
    %91 = vmatprep.subr.mxu0 0.0
    %92 = vmatpush1.msra.mxu0 %v46
    %93 = vmatprep.subr.mxu0 0.0
    %94 = vmatpush1.msra.mxu0 %v45
    %95 = vmatprep.subr.mxu0 0.0
    %96 = vmatpush2.msra.mxu0 0.0
    %97 = vmatprep.subr.mxu0 0.0
    %98 = vmatpush2.msra.mxu0 0.0
    %99 = vmatprep.subr.mxu0 0.0
    %100 = vmatpush2.msra.mxu0 0.0
    %101 = vmatprep.subr.mxu0 0.0
    %102 = vmatpush2.msra.mxu0 0.0
    %103 = vmatprep.subr.mxu0 0.0
    %104 = vmatpush2.msra.mxu0 0.0
    %105 = vmatprep.subr.mxu0 0.0
    %106 = vmatpush2.msra.mxu0 0.0
    %107 = vmatprep.subr.mxu0 0.0
    %108 = vmatpush2.msra.mxu0 0.0
    %109 = vmatprep.subr.mxu0 0.0
    %110 = vmatpush2.msra.mxu0 0.0
    %111 = vmatprep.subr.mxu0 0.0
    %112 = vmatpush2.msra.mxu0 0.0
    %113 = vmatprep.subr.mxu0 0.0
    %114 = vmatpush2.msra.mxu0 0.0
    %115 = vmatprep.subr.mxu0 0.0
    %116 = vmatpush2.msra.mxu0 0.0
    %117 = vmatprep.subr.mxu0 0.0
    %118 = vmatpush2.msra.mxu0 0.0
    %119 = vmatprep.subr.mxu0 0.0
    %120 = vmatpush2.msra.mxu0 0.0
    %121 = vmatprep.subr.mxu0 0.0
    %122 = vmatpush2.msra.mxu0 0.0
    %123 = vmatprep.subr.mxu0 0.0
    %124 = vmatpush2.msra.mxu0 0.0
    %125 = vmatprep.subr.mxu0 0.0
    %126 = vmatpush2.msra.mxu0 0.0
    %127 = vmatprep.mubr.f32.mxu0 0.0
    %128 = vmatmul.mubr.f32.gmra.mxu0 %v58
    %v129 = vpop.f32.mrf.mxu0
    %v130 = vadd.f32 %v54, %v129
    %v131 = vpop.f32.mrf.mxu0
    %132 = vmatprep.mubr.f32.mxu0 0.0
    %133 = vmatmul.mubr.f32.gmra.mxu0 %v61
    %v134 = vpop.f32.mrf.mxu0
    %v135 = vadd.f32 %v54, %v134
    %v136 = vpop.f32.mrf.mxu0
    %137 = vdwg.mxu0
    %vm138 = vcmp.ge.f32.partialorder %v130, 0.0
    %vm139 = vcmp.ge.f32.partialorder %v135, 0.0
    %v140 = vmul.f32 %v130, 0.01
    %v141 = vmul.f32 %v135, 0.01
    %v142 = vsel %vm138, %v130, %v140
    %v143 = vsel %vm139, %v135, %v141
    %v144 = vrot.slane %v142, 4
    %v145 = vadd.f32 %v142, %v144
    %v146 = vrot.slane %v145, 2
    %v147 = vadd.f32 %v145, %v146
    %v148 = vrot.slane %v147, 1
    %v149 = vadd.f32 %v147, %v148
    %v150 = vrot.slane %v143, 4
    %v151 = vadd.f32 %v143, %v150
    %v152 = vrot.slane %v151, 2
    %v153 = vadd.f32 %v151, %v152
    %v154 = vrot.slane %v153, 1
    %v155 = vadd.f32 %v153, %v154
    %v156 = vmul.f32 %v149, 0.125
    %v157 = vmul.f32 %v155, 0.125
    %vm160 = vcmask 1041409
    %v161 = vsel %vm160, %v157, %v156
    %163 = vst [vmem:[#allocation7] sm:$0x3] %v161
    // Predicated region
    $region22: #{tpu_custom_call.1} parent=1 // pred_check
      _
    $region23: #{tpu_custom_call.1} parent=1 // pred_check_branch
      %165 = sbr.rel (0) target = $region25
    $region24: #{tpu_custom_call.1} parent=1 // pred_region
      %s167 = ssub.s32 32, 32
      %168 = vsyncadd [#allocation4], %s167
      %s170 = sshll.u32 [#allocation7], 4
      %s171 = int_to_ptr.vmem [resolvable:$true] %s170
      %173 = dma.vmem_to_hbm [thread:$0]  %s171, 32, %s3, [#allocation4]
    $region25: #{tpu_custom_call.1} parent=1 // pred_fallthru
      _
    // Predicated region
    $region26: #{tpu_custom_call.1} parent=1 // pred_check
      _
    $region27: #{tpu_custom_call.1} parent=1 // pred_check_branch
      %175 = sbr.rel (0) target = $region29
    $region28: #{tpu_custom_call.1} parent=1 // pred_region
      %176 = dma.done [#allocation4], 32
    $region29: #{tpu_custom_call.1} parent=1 // pred_fallthru
      _
    %177 = vsyncpa [#allocation3], 1
    %178 = vsyncpa [#allocation6], 1
    %179 = vsyncpa [#allocation4], 1

// kernel: tpu_custom_call.1
$region0: #{tpu_custom_call.1}
  #allocation0 [shape = 'u32[]', space=smem, size = 0x4, offset = 0x4, fixed_abs, tag = 'smem constant byte address 0x4 - core index']
  #allocation1 [shape = 'u32[144,128]{1,0:T(1,128)}', space=vmem, size = 0x12000, scoped, tag = 'internal scratch']
  %s0 = inlined_call_operand.hbm [shape: f32[2,8,32], index: 0, kind: input, shape index: {}]
  %s1 = inlined_call_operand.hbm [shape: f32[32,128], index: 1, kind: input, shape index: {}]
  %s2 = inlined_call_operand.vmem [shape: f32[1,128], index: 2, kind: input, shape index: {}]
  %s3 = inlined_call_operand.hbm [shape: f32[2,128], index: 3, kind: output, shape index: {}]
  %s4 = sld [smem:[#allocation0]]
  $region30: #{tpu_custom_call.1} parent=0
    _
  %s6 = ssub.s32 1, %s4
  %s7 = scalar_select 0, %s6, %s4
  $region1: #{tpu_custom_call.1} parent=0
    #allocation2 [shape = 'u8[8192]{0}', space=vmem, size = 0x2000, scoped, tag = 'input window, operand 0, single buffered']
    #allocation3 [shape = 's32[1]{0}', space=sflag, size = 0x4, scoped, tag = 'scoped memory for tpu_custom_call.1']
    #allocation4 [shape = 's32[1]{0}', space=sflag, size = 0x4, scoped, tag = 'scoped memory for tpu_custom_call.1']
    #allocation5 [shape = 'u8[16384]{0}', space=vmem, size = 0x4000, scoped, tag = 'input window, operand 1, single buffered']
    #allocation6 [shape = 's32[1]{0}', space=sflag, size = 0x4, scoped, tag = 'scoped memory for tpu_custom_call.1']
    #allocation7 [shape = 'u8[1024]{0}', space=vmem, size = 0x400, scoped, tag = 'output window, operand 0, single buffered']
    %8 = vsyncpa [#allocation3], 0
    %9 = vsyncpa [#allocation6], 0
    %10 = vsyncpa [#allocation4], 0
    // Predicated region
    $region2: #{tpu_custom_call.1} parent=1 // pred_check
      _
    $region3: #{tpu_custom_call.1} parent=1 // pred_check_branch
      %12 = sbr.rel (0) target = $region5
    $region4: #{tpu_custom_call.1} parent=1 // pred_region
      %s14 = ssub.s32 256, 256
      %15 = vsyncadd [#allocation3], %s14
      %s16 = sshll.u32 [#allocation2], 4
      %s17 = int_to_ptr.vmem [resolvable:$true] %s16
      %22 = dma.hbm_to_vmem [thread:$0]  %s0, 256, %s17, [#allocation3], 128, 128, 8
    $region5: #{tpu_custom_call.1} parent=1 // pred_fallthru
      _
    // Predicated region
    $region6: #{tpu_custom_call.1} parent=1 // pred_check
      _
    $region7: #{tpu_custom_call.1} parent=1 // pred_check_branch
      %24 = sbr.rel (0) target = $region9
    $region8: #{tpu_custom_call.1} parent=1 // pred_region
      %s26 = ssub.s32 512, 512
      %27 = vsyncadd [#allocation6], %s26
      %s28 = sshll.u32 [#allocation5], 4
      %s29 = int_to_ptr.vmem [resolvable:$true] %s28
      %34 = dma.hbm_to_vmem [thread:$0]  %s1, 512, %s29, [#allocation6], 128, 128, 8
    $region9: #{tpu_custom_call.1} parent=1 // pred_fallthru
      _
    // Predicated region
    $region10: #{tpu_custom_call.1} parent=1 // pred_check
      _
    $region11: #{tpu_custom_call.1} parent=1 // pred_check_branch
      %36 = sbr.rel (0) target = $region13
    $region12: #{tpu_custom_call.1} parent=1 // pred_region
      _
    $region13: #{tpu_custom_call.1} parent=1 // pred_fallthru
      _
    // Predicated region
    $region14: #{tpu_custom_call.1} parent=1 // pred_check
      _
    $region15: #{tpu_custom_call.1} parent=1 // pred_check_branch
      %38 = sbr.rel (0) target = $region17
    $region16: #{tpu_custom_call.1} parent=1 // pred_region
      %39 = dma.done [#allocation3], 256
    $region17: #{tpu_custom_call.1} parent=1 // pred_fallthru
      _
    // Predicated region
    $region18: #{tpu_custom_call.1} parent=1 // pred_check
      _
    $region19: #{tpu_custom_call.1} parent=1 // pred_check_branch
      %41 = sbr.rel (0) target = $region21
    $region20: #{tpu_custom_call.1} parent=1 // pred_region
      %42 = dma.done [#allocation6], 512
    $region21: #{tpu_custom_call.1} parent=1 // pred_fallthru
      _
    %v43 = vld [vmem:[#allocation2] sm:$0xff]
    %v44 = vld [vmem:[#allocation2 + $0x8] sm:$0xff]
    %v45 = vld [vmem:[#allocation5] sm:$0xff]
    %v46 = vld [vmem:[#allocation5 + $0x8] sm:$0xff]
    %v47 = vld [vmem:[#allocation5 + $0x10] sm:$0xff]
    %v48 = vld [vmem:[#allocation5 + $0x18] sm:$0xff]
    %v49 = vld [vmem:[%s2] sm:$0x1]
    %v51 = vlaneseq
    %v52 = vshrl.u32 %v51, 7
    %v53 = vsub.s32 0, %v52
    %v54 = vrot.slane %v49, %v53
    %vm56 = vcmask 261120
    %v58 = vsel %vm56, %v43, 0
    %v61 = vsel %vm56, %v44, 0
    %63 = vmatprep.subr.mxu0 0.0
    %64 = vmatpush1.msra.mxu0 0.0
    %65 = vmatprep.subr.mxu0 0.0
    %66 = vmatpush1.msra.mxu0 0.0
    %67 = vmatprep.subr.mxu0 0.0
    %68 = vmatpush1.msra.mxu0 0.0
    %69 = vmatprep.subr.mxu0 0.0
    %70 = vmatpush1.msra.mxu0 0.0
    %71 = vmatprep.subr.mxu0 0.0
    %72 = vmatpush1.msra.mxu0 0.0
    %73 = vmatprep.subr.mxu0 0.0
    %74 = vmatpush1.msra.mxu0 0.0
    %75 = vmatprep.subr.mxu0 0.0
    %76 = vmatpush1.msra.mxu0 0.0
    %77 = vmatprep.subr.mxu0 0.0
    %78 = vmatpush1.msra.mxu0 0.0
    %79 = vmatprep.subr.mxu0 0.0
    %80 = vmatpush1.msra.mxu0 0.0
    %81 = vmatprep.subr.mxu0 0.0
    %82 = vmatpush1.msra.mxu0 0.0
    %83 = vmatprep.subr.mxu0 0.0
    %84 = vmatpush1.msra.mxu0 0.0
    %85 = vmatprep.subr.mxu0 0.0
    %86 = vmatpush1.msra.mxu0 0.0
    %87 = vmatprep.subr.mxu0 0.0
    %88 = vmatpush1.msra.mxu0 %v48
    %89 = vmatprep.subr.mxu0 0.0
    %90 = vmatpush1.msra.mxu0 %v47
    %91 = vmatprep.subr.mxu0 0.0
    %92 = vmatpush1.msra.mxu0 %v46
    %93 = vmatprep.subr.mxu0 0.0
    %94 = vmatpush1.msra.mxu0 %v45
    %95 = vmatprep.subr.mxu0 0.0
    %96 = vmatpush2.msra.mxu0 0.0
    %97 = vmatprep.subr.mxu0 0.0
    %98 = vmatpush2.msra.mxu0 0.0
    %99 = vmatprep.subr.mxu0 0.0
    %100 = vmatpush2.msra.mxu0 0.0
    %101 = vmatprep.subr.mxu0 0.0
    %102 = vmatpush2.msra.mxu0 0.0
    %103 = vmatprep.subr.mxu0 0.0
    %104 = vmatpush2.msra.mxu0 0.0
    %105 = vmatprep.subr.mxu0 0.0
    %106 = vmatpush2.msra.mxu0 0.0
    %107 = vmatprep.subr.mxu0 0.0
    %108 = vmatpush2.msra.mxu0 0.0
    %109 = vmatprep.subr.mxu0 0.0
    %110 = vmatpush2.msra.mxu0 0.0
    %111 = vmatprep.subr.mxu0 0.0
    %112 = vmatpush2.msra.mxu0 0.0
    %113 = vmatprep.subr.mxu0 0.0
    %114 = vmatpush2.msra.mxu0 0.0
    %115 = vmatprep.subr.mxu0 0.0
    %116 = vmatpush2.msra.mxu0 0.0
    %117 = vmatprep.subr.mxu0 0.0
    %118 = vmatpush2.msra.mxu0 0.0
    %119 = vmatprep.subr.mxu0 0.0
    %120 = vmatpush2.msra.mxu0 0.0
    %121 = vmatprep.subr.mxu0 0.0
    %122 = vmatpush2.msra.mxu0 0.0
    %123 = vmatprep.subr.mxu0 0.0
    %124 = vmatpush2.msra.mxu0 0.0
    %125 = vmatprep.subr.mxu0 0.0
    %126 = vmatpush2.msra.mxu0 0.0
    %127 = vmatprep.mubr.f32.mxu0 0.0
    %128 = vmatmul.mubr.f32.gmra.mxu0 %v58
    %v129 = vpop.f32.mrf.mxu0
    %v130 = vadd.f32 %v54, %v129
    %v131 = vpop.f32.mrf.mxu0
    %132 = vmatprep.mubr.f32.mxu0 0.0
    %133 = vmatmul.mubr.f32.gmra.mxu0 %v61
    %v134 = vpop.f32.mrf.mxu0
    %v135 = vadd.f32 %v54, %v134
    %v136 = vpop.f32.mrf.mxu0
    %137 = vdwg.mxu0
    %vm138 = vcmp.ge.f32.partialorder %v130, 0.0
    %vm139 = vcmp.ge.f32.partialorder %v135, 0.0
    %v140 = vmul.f32 %v130, 0.01
    %v141 = vmul.f32 %v135, 0.01
    %v142 = vsel %vm138, %v130, %v140
    %v143 = vsel %vm139, %v135, %v141
    %v144 = vrot.slane %v142, 4
    %v145 = vadd.f32 %v142, %v144
    %v146 = vrot.slane %v145, 2
    %v147 = vadd.f32 %v145, %v146
    %v148 = vrot.slane %v147, 1
    %v149 = vadd.f32 %v147, %v148
    %v150 = vrot.slane %v143, 4
    %v151 = vadd.f32 %v143, %v150
    %v152 = vrot.slane %v151, 2
    %v153 = vadd.f32 %v151, %v152
    %v154 = vrot.slane %v153, 1
    %v155 = vadd.f32 %v153, %v154
    %v156 = vmul.f32 %v149, 0.125
    %v157 = vmul.f32 %v155, 0.125
    %vm160 = vcmask 1041409
    %v161 = vsel %vm160, %v157, %v156
    %163 = vst [vmem:[#allocation7] sm:$0x3] %v161
    // Predicated region
    $region22: #{tpu_custom_call.1} parent=1 // pred_check
      _
    $region23: #{tpu_custom_call.1} parent=1 // pred_check_branch
      %165 = sbr.rel (0) target = $region25
    $region24: #{tpu_custom_call.1} parent=1 // pred_region
      %s167 = ssub.s32 32, 32
      %168 = vsyncadd [#allocation4], %s167
      %s170 = sshll.u32 [#allocation7], 4
      %s171 = int_to_ptr.vmem [resolvable:$true] %s170
      %173 = dma.vmem_to_hbm [thread:$0]  %s171, 32, %s3, [#allocation4]
    $region25: #{tpu_custom_call.1} parent=1 // pred_fallthru
      _
    // Predicated region
    $region26: #{tpu_custom_call.1} parent=1 // pred_check
      _
    $region27: #{tpu_custom_call.1} parent=1 // pred_check_branch
      %175 = sbr.rel (0) target = $region29
    $region28: #{tpu_custom_call.1} parent=1 // pred_region
      %176 = dma.done [#allocation4], 32
    $region29: #{tpu_custom_call.1} parent=1 // pred_fallthru
      _
    %177 = vsyncpa [#allocation3], 1
    %178 = vsyncpa [#allocation6], 1
    %179 = vsyncpa [#allocation4], 1

</llo_original>
